<compile_context>
chip_gen: v5e
topology: v5e:2x2
jax: 0.10.0
libtpu: 0.0.40
codegen_flags: <defaults>
</compile_context>

<pallas_src>
import functools

import jax
import jax.numpy as jnp
import numpy as np
from jax.experimental import pallas as pl
from jax.experimental.pallas import tpu as pltpu


# ----------------------------------------------------------------------------
# Kernel 1: weight generation  (1x1 conv + folded BN -> ReLU -> 1x1 conv)
# x rows are bf16; matmuls/accumulation in f32.
# ----------------------------------------------------------------------------
def weight_gen_kernel(x_ref, w1_ref, b1_ref, w2_ref, b2_ref, o_ref):
    x = x_ref[...].astype(jnp.float32)
    y = jnp.dot(x, w1_ref[...], preferred_element_type=jnp.float32) + b1_ref[...]
    y = jnp.maximum(y, 0.0)
    z = jnp.dot(y, w2_ref[...], preferred_element_type=jnp.float32) + b2_ref[...]
    o_ref[...] = z.astype(o_ref.dtype)


# ----------------------------------------------------------------------------
# Kernel 2: involution aggregation on row-flattened, width-padded planes.
#   x_ref : (1, (H+K)*Wp, C)   bf16 padded activation (rows are Wp wide)
#   w_ref : (1, H*Wp, K2*G)    f32 per-pixel weights, columns in (k, g) order
#   e_ref : (G, C)             one-hot group->channel expansion matrix
#   o_ref : (1, H*Wp, C)       f32 output (garbage columns sliced off outside)
# For tap (ki, kj) the needed input rows are exactly the output rows shifted
# by a constant offset ki*Wp + kj, so every tap is one contiguous 2D slice.
# ----------------------------------------------------------------------------
def involution_kernel(x_ref, w_ref, e_ref, o_ref, *, K, Wp, n_rows, G):
    C = o_ref.shape[-1]
    e = e_ref[...]
    # TODO(synk): for large H*W*C strip-mine the rows (inner fori_loop / extra
    # grid axis) so the f32 accumulator does not spill out of the vreg file.
    acc = jnp.zeros((n_rows, C), jnp.float32)
    for ki in range(K):
        for kj in range(K):
            k = ki * K + kj
            off = ki * Wp + kj
            patch = x_ref[0, off:off + n_rows, :].astype(jnp.float32)   # (rows, C)
            wk = w_ref[0, :, k * G:(k + 1) * G]                          # (rows, G)
            # broadcast the per-group weight across its 16 channels on the MXU
            wexp = jnp.dot(wk, e, preferred_element_type=jnp.float32)    # (rows, C)
            acc = acc + patch * wexp
    o_ref[0] = acc.astype(o_ref.dtype)


# ----------------------------------------------------------------------------
# Wrapper
# ----------------------------------------------------------------------------
def involution_forward(x_nchw, params, kernel_size, stride):
    K = kernel_size
    assert K % 2 == 1
    gch = 16                                   # group_channels
    B, C, H0, W0 = x_nchw.shape
    G = C // gch
    K2 = K * K
    GK2 = G * K2

    if stride > 1:
        # The reference module reassigns x to the pooled tensor, so pooling
        # feeds BOTH the weight-generation path and the unfold path.
        x_nchw = x_nchw.reshape(B, C, H0 // stride, stride, W0 // stride, stride)
        x_nchw = x_nchw.mean(axis=(3, 5))      # AvgPool2d(stride, stride)

    B, C, H, W = x_nchw.shape
    N = B * H * W
    pad = (K - 1) // 2
    Wp = W + K - 1

    # ---- parameter prep (trace-time, tiny) ----
    W1, b1, s, t, W2, b2 = (params["W1"], params["b1"], params["s"],
                            params["t"], params["W2"], params["b2"])
    Cr = W1.shape[1]
    # fold BN (inference) scale/shift and conv1 bias: y = relu(x@W1f + b1f)
    W1f = (W1 * s[None, :]).astype(jnp.float32)
    b1f = (b1 * s + t).reshape(1, Cr).astype(jnp.float32)
    # permute conv2 output columns from (g-major, k) to (k-major, g) order so
    # kernel 2 reads a contiguous G-wide slice per tap (no strided lane reads).
    perm = np.arange(GK2).reshape(G, K2).T.reshape(-1)
    W2p = W2[:, perm].astype(jnp.float32)
    b2p = b2[perm].reshape(1, GK2).astype(jnp.float32)
    # one-hot group -> channel expansion matrix (runs on the idle MXU)
    E = jnp.asarray(np.kron(np.eye(G, dtype=np.float32),
                            np.ones((1, gch), np.float32)))              # (G, C)

    # activation in bf16: halves HBM traffic for both passes
    x_nhwc = jnp.transpose(x_nchw.astype(jnp.bfloat16), (0, 2, 3, 1))    # (B,H,W,C)
    x2d = x_nhwc.reshape(N, C)

    # ---- kernel 1: weight generation ----
    if N >= 1024:
        tn = 512                                # big tile (~85% HBM roofline)
    else:
        tn = max(8, (((N + 1) // 2) + 7) // 8 * 8)   # keep >=2 grid steps (v7x)
    Np = ((N + tn - 1) // tn) * tn
    if Np != N:
        x2d = jnp.pad(x2d, ((0, Np - N), (0, 0)))    # pad rows, keep pipeline

    # TODO(synk): for realistic configs with GK2 >= 128, pad GK2 up to a
    # multiple of 128 so kernel-1 output stores are unmasked.
    w_cols = pl.pallas_call(
        weight_gen_kernel,
        out_shape=jax.ShapeDtypeStruct((Np, GK2), jnp.float32),
        grid=(Np // tn,),
        in_specs=[
            pl.BlockSpec((tn, C), lambda i: (i, 0)),
            pl.BlockSpec((C, Cr), lambda i: (0, 0)),
            pl.BlockSpec((1, Cr), lambda i: (0, 0)),
            pl.BlockSpec((Cr, GK2), lambda i: (0, 0)),
            pl.BlockSpec((1, GK2), lambda i: (0, 0)),
        ],
        out_specs=pl.BlockSpec((tn, GK2), lambda i: (i, 0)),
        compiler_params=pltpu.CompilerParams(
            dimension_semantics=("parallel",),
            vmem_limit_bytes=32 * 1024 * 1024),
    )(x2d, W1f, b1f, W2p, b2p)
    w_cols = w_cols[:N]

    # per-pixel weights with Wp-wide rows (zero weights on the K-1 pad columns)
    w_rows = w_cols.reshape(B, H, W, GK2)
    w_rows = jnp.pad(w_rows, ((0, 0), (0, 0), (0, K - 1), (0, 0)))
    w_flat = w_rows.reshape(B, H * Wp, GK2)

    # spatially padded activation, row-flattened; one extra bottom row keeps
    # the garbage columns of the last output row in bounds.
    xpad = jnp.pad(x_nhwc, ((0, 0), (pad, pad + 1), (pad, pad), (0, 0)))
    Hp2 = H + K
    x_flat = xpad.reshape(B, Hp2 * Wp, C)

    n_rows = H * Wp
    out_flat = pl.pallas_call(
        functools.partial(involution_kernel, K=K, Wp=Wp, n_rows=n_rows, G=G),
        out_shape=jax.ShapeDtypeStruct((B, n_rows, C), jnp.float32),
        grid=(B,),
        in_specs=[
            pl.BlockSpec((1, Hp2 * Wp, C), lambda b: (b, 0, 0)),
            pl.BlockSpec((1, n_rows, GK2), lambda b: (b, 0, 0)),
            pl.BlockSpec((G, C), lambda b: (0, 0)),
        ],
        out_specs=pl.BlockSpec((1, n_rows, C), lambda b: (b, 0, 0)),
        compiler_params=pltpu.CompilerParams(
            dimension_semantics=("parallel",),
            vmem_limit_bytes=32 * 1024 * 1024),
    )(x_flat, w_flat, E)

    # drop the Wp-W garbage columns and return NCHW for interface parity.
    out_nhwc = out_flat.reshape(B, H, Wp, C)[:, :, :W, :]
    return jnp.transpose(out_nhwc, (0, 3, 1, 2))


# ----------------------------------------------------------------------------
# Pure-JAX reference (mirrors the PyTorch forward, inference-mode BN, f32)
# ----------------------------------------------------------------------------
def involution_ref(x_nchw, params, kernel_size, stride):
    K = kernel_size
    gch = 16
    B, C, H0, W0 = x_nchw.shape
    G = C // gch
    if stride > 1:
        x_nchw = x_nchw.reshape(B, C, H0 // stride, stride, W0 // stride, stride)
        x_nchw = x_nchw.mean(axis=(3, 5))
    B, C, H, W = x_nchw.shape
    xn = jnp.transpose(x_nchw, (0, 2, 3, 1))
    y = xn @ params["W1"] + params["b1"]
    y = y * params["s"] + params["t"]
    y = jnp.maximum(y, 0.0)
    w = y @ params["W2"] + params["b2"]                     # (B, H, W, G*K^2)
    w = w.reshape(B, H, W, G, K * K)
    pad = (K - 1) // 2
    xp = jnp.pad(xn, ((0, 0), (pad, pad), (pad, pad), (0, 0)))
    out = jnp.zeros((B, H, W, C), jnp.float32)
    for ki in range(K):
        for kj in range(K):
            patch = xp[:, ki:ki + H, kj:kj + W, :]
            wk = jnp.repeat(w[:, :, :, :, ki * K + kj], gch, axis=-1)
            out = out + patch * wk
    return jnp.transpose(out, (0, 3, 1, 2))


if __name__ == "__main__":
    # Module hyper-parameters (channels must be a multiple of 16 and of 4)
    channels, kernel_size, stride = 32, 3, 1
    B, H, W = 2, 16, 16
    Cr = channels // 4                   # reduction_ratio = 4
    G = channels // 16                   # groups
    GK2 = kernel_size * kernel_size * G

    key = jax.random.PRNGKey(0)
    kx, k1, k2, k3, k4, k5, k6 = jax.random.split(key, 7)

    x = jax.random.normal(kx, (B, channels, H, W), jnp.float32)

    # Deterministic synthetic parameters
    W1 = jax.random.normal(k1, (channels, Cr), jnp.float32) * 0.1   # conv1 (1x1)
    b1 = jax.random.normal(k2, (Cr,), jnp.float32) * 0.1
    gamma = 1.0 + 0.1 * jax.random.normal(k3, (Cr,), jnp.float32)   # BN affine
    beta = 0.1 * jax.random.normal(k4, (Cr,), jnp.float32)
    running_mean = jnp.zeros((Cr,), jnp.float32)                    # PyTorch defaults
    running_var = jnp.ones((Cr,), jnp.float32)
    eps = 1e-5
    s = gamma / jnp.sqrt(running_var + eps)
    t = beta - running_mean * s
    W2 = jax.random.normal(k5, (Cr, GK2), jnp.float32) * 0.1        # conv2 (1x1)
    b2 = jax.random.normal(k6, (GK2,), jnp.float32) * 0.1

    params = {"W1": W1, "b1": b1, "s": s, "t": t, "W2": W2, "b2": b2}

    out = involution_forward(x, params, kernel_size, stride)
    out = jax.block_until_ready(out)

    ref = jax.block_until_ready(involution_ref(x, params, kernel_size, stride))
    np.testing.assert_allclose(np.asarray(out), np.asarray(ref), rtol=5e-2, atol=5e-2)

    print("KERNEL_OK")
</pallas_src>

<mosaic_0001>
module attributes {stable_mosaic.version = 11 : i64} {
  func.func @weight_gen_kernel(%arg0: i32, %arg1: memref<256x32xbf16, #tpu.memory_space<vmem>>, %arg2: memref<32x8xf32, #tpu.memory_space<vmem>>, %arg3: memref<1x8xf32, #tpu.memory_space<vmem>>, %arg4: memref<8x18xf32, #tpu.memory_space<vmem>>, %arg5: memref<1x18xf32, #tpu.memory_space<vmem>>, %arg6: memref<256x18xf32, #tpu.memory_space<vmem>>) attributes {dimension_semantics = [#tpu.dimension_semantics<parallel>], iteration_bounds = array<i64: 2>, scalar_prefetch = 0 : i64, scratch_operands = 0 : i64, tpu.core_type = #tpu.core_type<tc>, window_params = [{transform_indices = @transform_0, window_bounds = array<i64: 256, 32>}, {pipeline_mode = #tpu.pipeline_mode<synchronous>, transform_indices = @transform_1, window_bounds = array<i64: 32, 8>}, {pipeline_mode = #tpu.pipeline_mode<synchronous>, transform_indices = @transform_2, window_bounds = array<i64: 1, 8>}, {pipeline_mode = #tpu.pipeline_mode<synchronous>, transform_indices = @transform_3, window_bounds = array<i64: 8, 18>}, {pipeline_mode = #tpu.pipeline_mode<synchronous>, transform_indices = @transform_4, window_bounds = array<i64: 1, 18>}, {transform_indices = @transform_5, window_bounds = array<i64: 256, 18>}]} {
    %c0 = arith.constant 0 : index
    %c0_0 = arith.constant 0 : index
    %0 = vector.load %arg1[%c0, %c0_0] : memref<256x32xbf16, #tpu.memory_space<vmem>>, vector<256x32xbf16>
    %1 = arith.extf %0 : vector<256x32xbf16> to vector<256x32xf32>
    %c0_1 = arith.constant 0 : index
    %c0_2 = arith.constant 0 : index
    %2 = vector.load %arg2[%c0_1, %c0_2] : memref<32x8xf32, #tpu.memory_space<vmem>>, vector<32x8xf32>
    %cst = arith.constant dense<0.000000e+00> : vector<256x8xf32>
    %3 = tpu.matmul %1, %2, %cst {dimension_numbers = #tpu.dot_dimension_numbers<[1], [0], [0], [1], [0, 0, 1, 1], [], []>} : vector<256x32xf32>, vector<32x8xf32>, vector<256x8xf32> -> vector<256x8xf32>
    %c0_3 = arith.constant 0 : index
    %c0_4 = arith.constant 0 : index
    %4 = vector.load %arg3[%c0_3, %c0_4] : memref<1x8xf32, #tpu.memory_space<vmem>>, vector<1x8xf32>
    %5 = vector.broadcast %4 : vector<1x8xf32> to vector<256x8xf32>
    %6 = arith.addf %3, %5 : vector<256x8xf32>
    %cst_5 = arith.constant 0.000000e+00 : f32
    %7 = vector.broadcast %cst_5 : f32 to vector<256x8xf32>
    %8 = arith.maximumf %6, %7 : vector<256x8xf32>
    %c0_6 = arith.constant 0 : index
    %c0_7 = arith.constant 0 : index
    %9 = vector.load %arg4[%c0_6, %c0_7] : memref<8x18xf32, #tpu.memory_space<vmem>>, vector<8x18xf32>
    %cst_8 = arith.constant dense<0.000000e+00> : vector<256x18xf32>
    %10 = tpu.matmul %8, %9, %cst_8 {dimension_numbers = #tpu.dot_dimension_numbers<[1], [0], [0], [1], [0, 0, 1, 1], [], []>} : vector<256x8xf32>, vector<8x18xf32>, vector<256x18xf32> -> vector<256x18xf32>
    %c0_9 = arith.constant 0 : index
    %c0_10 = arith.constant 0 : index
    %11 = vector.load %arg5[%c0_9, %c0_10] : memref<1x18xf32, #tpu.memory_space<vmem>>, vector<1x18xf32>
    %12 = vector.broadcast %11 : vector<1x18xf32> to vector<256x18xf32>
    %13 = arith.addf %10, %12 : vector<256x18xf32>
    %c0_11 = arith.constant 0 : index
    %c0_12 = arith.constant 0 : index
    %14 = vector.load %arg6[%c0_11, %c0_12] : memref<256x18xf32, #tpu.memory_space<vmem>>, vector<256x18xf32>
    tpu.vector_store %arg6[%c0_11, %c0_12], %13 {strides = array<i32>} : memref<256x18xf32, #tpu.memory_space<vmem>>, vector<256x18xf32>,
    return
  }
  func.func @transform_0(%arg0: i32) -> (i32, i32) {
    %c0_i32 = arith.constant 0 : i32
    %c0_i32_0 = arith.constant 0 : i32
    return %arg0, %c0_i32 : i32, i32
  }
  func.func @transform_1(%arg0: i32) -> (i32, i32) {
    %c0_i32 = arith.constant 0 : i32
    %c0_i32_0 = arith.constant 0 : i32
    %c0_i32_1 = arith.constant 0 : i32
    return %c0_i32, %c0_i32_0 : i32, i32
  }
  func.func @transform_2(%arg0: i32) -> (i32, i32) {
    %c0_i32 = arith.constant 0 : i32
    %c0_i32_0 = arith.constant 0 : i32
    %c0_i32_1 = arith.constant 0 : i32
    return %c0_i32, %c0_i32_0 : i32, i32
  }
  func.func @transform_3(%arg0: i32) -> (i32, i32) {
    %c0_i32 = arith.constant 0 : i32
    %c0_i32_0 = arith.constant 0 : i32
    %c0_i32_1 = arith.constant 0 : i32
    return %c0_i32, %c0_i32_0 : i32, i32
  }
  func.func @transform_4(%arg0: i32) -> (i32, i32) {
    %c0_i32 = arith.constant 0 : i32
    %c0_i32_0 = arith.constant 0 : i32
    %c0_i32_1 = arith.constant 0 : i32
    return %c0_i32, %c0_i32_0 : i32, i32
  }
  func.func @transform_5(%arg0: i32) -> (i32, i32) {
    %c0_i32 = arith.constant 0 : i32
    %c0_i32_0 = arith.constant 0 : i32
    return %arg0, %c0_i32 : i32, i32
  }
}

</mosaic_0001>

<llo_original>
// kernel: tpu_custom_call.1
$region0: #{tpu_custom_call.1}
  #allocation0 [shape = 'u32[]', space=smem, size = 0x4, offset = 0x4, fixed_abs, tag = 'smem constant byte address 0x4 - core index']
  #allocation1 [shape = 'u32[72,128]{1,0:T(1,128)}', space=vmem, size = 0x9000, scoped, tag = 'internal scratch']
  %s0 = inlined_call_operand.vmem [shape: bf16[512,32], index: 0, kind: input, shape index: {}]
  %s1 = inlined_call_operand.vmem [shape: f32[32,8], index: 1, kind: input, shape index: {}]
  %s2 = inlined_call_operand.vmem [shape: f32[1,8], index: 2, kind: input, shape index: {}]
  %s3 = inlined_call_operand.vmem [shape: f32[8,18], index: 3, kind: input, shape index: {}]
  %s4 = inlined_call_operand.vmem [shape: f32[1,18], index: 4, kind: input, shape index: {}]
  %s5 = inlined_call_operand.vmem [shape: f32[512,18], index: 5, kind: output, shape index: {}]
  %s6 = sld [smem:[#allocation0]]
  $region53: #{tpu_custom_call.1} parent=0
    _
  %s8 = ssub.s32 1, %s6
  %s9 = scalar_select 0, %s8, %s6
  loop: start=0, step=1, limit=4
  $region2: #{tpu_custom_call.1} parent=0 // loop_pre_header
    _
  $region3: #{tpu_custom_call.1} parent=0 // loop_header
    %s11 = sphi 0, %s15
    %p12 = scmp.ge.s32.totalorder %s11, 4
    %s21 = sphi 0, %s23
    %s24 = sphi 0, %s21
    %s25 = sphi 0, %s24
    %s41 = sphi 0, %s25
    %s45 = sphi 0, %s45
    %s47 = sphi 0, %s45
    %s48 = sphi 0, %s47
    %s62 = sphi 0, %s48
    %s66 = sphi 0, %s66
    %s68 = sphi 0, %s66
    %s69 = sphi 0, %s68
    %s83 = sphi 0, %s69
    %s87 = sphi 0, %s87
    %s89 = sphi 0, %s87
    %s90 = sphi 0, %s89
    %s104 = sphi 0, %s90
    %s108 = sphi 0, %s108
    %s110 = sphi 0, %s108
    %s111 = sphi 0, %s110
    %s125 = sphi 0, %s111
    %s131 = sphi 0, %s133
    %s134 = sphi 0, %s131
    %s135 = sphi 0, %s134
    %s151 = sphi 0, %s135
  $region4: #{tpu_custom_call.1} parent=0 // loop_header_branch
    %14 = sbr.rel (%p12) target = $region8
  $region5: #{tpu_custom_call.1} parent=0 // loop_body
    %s16 = ssub.s32 %s11, 1
    %s17 = ssub.s32 %s11, 2
    %s18 = sadd.s32 %s11, 1
    %s19 = ssub.s32 %s11, %s18
    %p20 = scmp.eq.s32.totalorder %s19, 0
    %s22 = sadd.s32 %s21, 1
    %s23 = scalar_select %p20, %s21, %s22
    %p26 = pneg %p20
    %p27 = scmp.eq.s32.totalorder %s11, 1
    %p28 = por %p26, %p27
    %p29 = scmp.ne.s32.totalorder %s21, %s24
    %p30 = scmp.eq.s32.totalorder %s11, 0
    %p31 = por %p29, %p30
    %p32 = scmp.ne.s32.totalorder %s21, %s24
    %p33 = scmp.eq.s32.totalorder %s16, 1
    %p34 = por %p32, %p33
    %p35 = scmp.ne.s32.totalorder %s24, %s25
    %p36 = scmp.eq.s32.totalorder %s16, 0
    %p37 = por %p35, %p36
    %p38 = scmp.ne.s32.totalorder %s24, %s25
    %p39 = scmp.eq.s32.totalorder %s17, 1
    %p40 = por %p38, %p39
    %p42 = scmp.ne.s32.totalorder %s25, %s41
    %p43 = scmp.eq.s32.totalorder %s17, 0
    %p44 = por %p42, %p43
    %s46 = sadd.s32 %s45, 1
    %p49 = scmp.eq.s32.totalorder %s11, 1
    %p50 = scmp.ne.s32.totalorder %s45, %s47
    %p51 = scmp.eq.s32.totalorder %s11, 0
    %p52 = por %p50, %p51
    %p53 = scmp.ne.s32.totalorder %s45, %s47
    %p54 = scmp.eq.s32.totalorder %s16, 1
    %p55 = por %p53, %p54
    %p56 = scmp.ne.s32.totalorder %s47, %s48
    %p57 = scmp.eq.s32.totalorder %s16, 0
    %p58 = por %p56, %p57
    %p59 = scmp.ne.s32.totalorder %s47, %s48
    %p60 = scmp.eq.s32.totalorder %s17, 1
    %p61 = por %p59, %p60
    %p63 = scmp.ne.s32.totalorder %s48, %s62
    %p64 = scmp.eq.s32.totalorder %s17, 0
    %p65 = por %p63, %p64
    %s67 = sadd.s32 %s66, 1
    %p70 = scmp.eq.s32.totalorder %s11, 1
    %p71 = scmp.ne.s32.totalorder %s66, %s68
    %p72 = scmp.eq.s32.totalorder %s11, 0
    %p73 = por %p71, %p72
    %p74 = scmp.ne.s32.totalorder %s66, %s68
    %p75 = scmp.eq.s32.totalorder %s16, 1
    %p76 = por %p74, %p75
    %p77 = scmp.ne.s32.totalorder %s68, %s69
    %p78 = scmp.eq.s32.totalorder %s16, 0
    %p79 = por %p77, %p78
    %p80 = scmp.ne.s32.totalorder %s68, %s69
    %p81 = scmp.eq.s32.totalorder %s17, 1
    %p82 = por %p80, %p81
    %p84 = scmp.ne.s32.totalorder %s69, %s83
    %p85 = scmp.eq.s32.totalorder %s17, 0
    %p86 = por %p84, %p85
    %s88 = sadd.s32 %s87, 1
    %p91 = scmp.eq.s32.totalorder %s11, 1
    %p92 = scmp.ne.s32.totalorder %s87, %s89
    %p93 = scmp.eq.s32.totalorder %s11, 0
    %p94 = por %p92, %p93
    %p95 = scmp.ne.s32.totalorder %s87, %s89
    %p96 = scmp.eq.s32.totalorder %s16, 1
    %p97 = por %p95, %p96
    %p98 = scmp.ne.s32.totalorder %s89, %s90
    %p99 = scmp.eq.s32.totalorder %s16, 0
    %p100 = por %p98, %p99
    %p101 = scmp.ne.s32.totalorder %s89, %s90
    %p102 = scmp.eq.s32.totalorder %s17, 1
    %p103 = por %p101, %p102
    %p105 = scmp.ne.s32.totalorder %s90, %s104
    %p106 = scmp.eq.s32.totalorder %s17, 0
    %p107 = por %p105, %p106
    %s109 = sadd.s32 %s108, 1
    %p112 = scmp.eq.s32.totalorder %s11, 1
    %p113 = scmp.ne.s32.totalorder %s108, %s110
    %p114 = scmp.eq.s32.totalorder %s11, 0
    %p115 = por %p113, %p114
    %p116 = scmp.ne.s32.totalorder %s108, %s110
    %p117 = scmp.eq.s32.totalorder %s16, 1
    %p118 = por %p116, %p117
    %p119 = scmp.ne.s32.totalorder %s110, %s111
    %p120 = scmp.eq.s32.totalorder %s16, 0
    %p121 = por %p119, %p120
    %p122 = scmp.ne.s32.totalorder %s110, %s111
    %p123 = scmp.eq.s32.totalorder %s17, 1
    %p124 = por %p122, %p123
    %p126 = scmp.ne.s32.totalorder %s111, %s125
    %p127 = scmp.eq.s32.totalorder %s17, 0
    %p128 = por %p126, %p127
    %s129 = ssub.s32 %s11, %s18
    %p130 = scmp.eq.s32.totalorder %s129, 0
    %s132 = sadd.s32 %s131, 1
    %s133 = scalar_select %p130, %s131, %s132
    %p136 = pneg %p130
    %p137 = scmp.eq.s32.totalorder %s11, 1
    %p138 = por %p136, %p137
    %p139 = scmp.ne.s32.totalorder %s131, %s134
    %p140 = scmp.eq.s32.totalorder %s11, 0
    %p141 = por %p139, %p140
    %p142 = scmp.ne.s32.totalorder %s131, %s134
    %p143 = scmp.eq.s32.totalorder %s16, 1
    %p144 = por %p142, %p143
    %p145 = scmp.ne.s32.totalorder %s134, %s135
    %p146 = scmp.eq.s32.totalorder %s16, 0
    %p147 = por %p145, %p146
    %p148 = scmp.ne.s32.totalorder %s134, %s135
    %p149 = scmp.eq.s32.totalorder %s17, 1
    %p150 = por %p148, %p149
    %p152 = scmp.ne.s32.totalorder %s135, %s151
    %p153 = scmp.eq.s32.totalorder %s17, 0
    %p154 = por %p152, %p153
    %p155 = scmp.le.s32.totalorder 1, %s11
    %p156 = scmp.lt.s32.totalorder %s11, 3
    %p157 = pnand %p155, %p156
    %p158 = pneg %p157
    // Predicated region
    $region9: #{tpu_custom_call.1} parent=5 // pred_check
      _
    $region10: #{tpu_custom_call.1} parent=5 // pred_check_branch
      %160 = sbr.rel (%p157) target = $region12
    $region11: #{tpu_custom_call.1} parent=5 // pred_region
      %s161 = ssub.s32 %s11, 1
      // Predicated region
      $region13: #{tpu_custom_call.1} parent=11 // pred_check
        %p162 = pneg %p58
      $region14: #{tpu_custom_call.1} parent=11 // pred_check_branch
        %164 = sbr.rel (%p162) target = $region16
      $region15: #{tpu_custom_call.1} parent=11 // pred_region
        _
      $region16: #{tpu_custom_call.1} parent=11 // pred_fallthru
        _
      // Predicated region
      $region17: #{tpu_custom_call.1} parent=11 // pred_check
        %p165 = pneg %p79
      $region18: #{tpu_custom_call.1} parent=11 // pred_check_branch
        %167 = sbr.rel (%p165) target = $region20
      $region19: #{tpu_custom_call.1} parent=11 // pred_region
        _
      $region20: #{tpu_custom_call.1} parent=11 // pred_fallthru
        _
      // Predicated region
      $region21: #{tpu_custom_call.1} parent=11 // pred_check
        %p168 = pneg %p100
      $region22: #{tpu_custom_call.1} parent=11 // pred_check_branch
        %170 = sbr.rel (%p168) target = $region24
      $region23: #{tpu_custom_call.1} parent=11 // pred_region
        _
      $region24: #{tpu_custom_call.1} parent=11 // pred_fallthru
        _
      // Predicated region
      $region25: #{tpu_custom_call.1} parent=11 // pred_check
        %p171 = pneg %p121
      $region26: #{tpu_custom_call.1} parent=11 // pred_check_branch
        %173 = sbr.rel (%p171) target = $region28
      $region27: #{tpu_custom_call.1} parent=11 // pred_region
        _
      $region28: #{tpu_custom_call.1} parent=11 // pred_fallthru
        _
    $region12: #{tpu_custom_call.1} parent=5 // pred_fallthru
      _
    %p174 = scmp.lt.s32.totalorder %s11, 2
    // Predicated region
    $region29: #{tpu_custom_call.1} parent=5 // pred_check
      %p175 = pneg %p174
    $region30: #{tpu_custom_call.1} parent=5 // pred_check_branch
      %177 = sbr.rel (%p175) target = $region32
    $region31: #{tpu_custom_call.1} parent=5 // pred_region
      // Predicated region
      $region33: #{tpu_custom_call.1} parent=31 // pred_check
        %p178 = pneg %p31
      $region34: #{tpu_custom_call.1} parent=31 // pred_check_branch
        %180 = sbr.rel (%p178) target = $region36
      $region35: #{tpu_custom_call.1} parent=31 // pred_region
        %s181 = smul.u32 32, %s11
        %p182 = scmp.lt.s32.totalorder %s181, 63
        %s183 = scalar_select %p182, %s181, 63
        %s184 = smul.addr %s183, 4
        %s185 = scalar_lea.vmem %s0, %s184
        %s186 = smul.u32 32, %s11
      $region36: #{tpu_custom_call.1} parent=31 // pred_fallthru
        _
    $region32: #{tpu_custom_call.1} parent=5 // pred_fallthru
      _
    %p187 = scmp.le.s32.totalorder 1, %s11
    %p188 = scmp.lt.s32.totalorder %s11, 3
    %p189 = pnand %p187, %p188
    %p190 = pneg %p189
    // Predicated region
    $region37: #{tpu_custom_call.1} parent=5 // pred_check
      _
    $region38: #{tpu_custom_call.1} parent=5 // pred_check_branch
      %192 = sbr.rel (%p189) target = $region40
    $region39: #{tpu_custom_call.1} parent=5 // pred_region
      %s193 = ssub.s32 %s11, 1
      %s194 = smul.u32 32, %s16
      %p195 = scmp.lt.s32.totalorder %s194, 63
      %s196 = scalar_select %p195, %s194, 63
      %s197 = smul.addr %s196, 4
      %s198 = scalar_lea.vmem %s0, %s197
      %p199 = pneg %p37
      %p200 = pneg %p34
      %p201 = pneg %p58
      %p202 = pneg %p55
      %p203 = pneg %p79
      %p204 = pneg %p76
      %p205 = pneg %p100
      %p206 = pneg %p97
      %p207 = pneg %p121
      %p208 = pneg %p118
      %p209 = pneg %p147
      %p210 = pneg %p144
      %s211 = smul.u32 32, %s16
      %p212 = scmp.lt.s32.totalorder %s211, 63
      %s213 = scalar_select %p212, %s211, 63
      %s214 = smul.addr %s213, 8
      %s215 = scalar_lea.vmem %s5, %s214
      %s216 = smul.u32 32, %s16
      %p217 = scmp.lt.s32.totalorder %s216, 63
      %s218 = scalar_select %p217, %s216, 63
      %s219 = smul.addr %s218, 4
      %s220 = scalar_lea.vmem %s0, %s219
      %s221 = smul.u32 32, %s16
      %s222 = smul.u32 32, %s16
      %p223 = scmp.lt.s32.totalorder %s222, 63
      %s224 = scalar_select %p223, %s222, 63
      %s225 = smul.addr %s224, 8
      %s226 = scalar_lea.vmem %s5, %s225
      %s227 = smul.u32 32, %s16
      %v228 = vld [vmem:[%s220] sm:$0xf]
      %v229 = vld [vmem:[%s220 + $0x4] sm:$0xf]
      %v230 = vld [vmem:[%s220 + $0x8] sm:$0xf]
      %v231 = vld [vmem:[%s220 + $0xc] sm:$0xf]
      %v232 = vld [vmem:[%s220 + $0x10] sm:$0xf]
      %v233 = vld [vmem:[%s220 + $0x14] sm:$0xf]
      %v234 = vld [vmem:[%s220 + $0x18] sm:$0xf]
      %v235 = vld [vmem:[%s220 + $0x1c] sm:$0xf]
      %v236 = vld [vmem:[%s220 + $0x20] sm:$0xf]
      %v237 = vld [vmem:[%s220 + $0x24] sm:$0xf]
      %v238 = vld [vmem:[%s220 + $0x28] sm:$0xf]
      %v239 = vld [vmem:[%s220 + $0x2c] sm:$0xf]
      %v240 = vld [vmem:[%s220 + $0x30] sm:$0xf]
      %v241 = vld [vmem:[%s220 + $0x34] sm:$0xf]
      %v242 = vld [vmem:[%s220 + $0x38] sm:$0xf]
      %v243 = vld [vmem:[%s220 + $0x3c] sm:$0xf]
      %v244 = vld [vmem:[%s220 + $0x40] sm:$0xf]
      %v245 = vld [vmem:[%s220 + $0x44] sm:$0xf]
      %v246 = vld [vmem:[%s220 + $0x48] sm:$0xf]
      %v247 = vld [vmem:[%s220 + $0x4c] sm:$0xf]
      %v248 = vld [vmem:[%s220 + $0x50] sm:$0xf]
      %v249 = vld [vmem:[%s220 + $0x54] sm:$0xf]
      %v250 = vld [vmem:[%s220 + $0x58] sm:$0xf]
      %v251 = vld [vmem:[%s220 + $0x5c] sm:$0xf]
      %v252 = vld [vmem:[%s220 + $0x60] sm:$0xf]
      %v253 = vld [vmem:[%s220 + $0x64] sm:$0xf]
      %v254 = vld [vmem:[%s220 + $0x68] sm:$0xf]
      %v255 = vld [vmem:[%s220 + $0x6c] sm:$0xf]
      %v256 = vld [vmem:[%s220 + $0x70] sm:$0xf]
      %v257 = vld [vmem:[%s220 + $0x74] sm:$0xf]
      %v258 = vld [vmem:[%s220 + $0x78] sm:$0xf]
      %v259 = vld [vmem:[%s220 + $0x7c] sm:$0xf]
      %v260 = vunpack.c.l.bf16 %v228
      %v261 = vunpack.c.l.bf16 %v229
      %v262 = vunpack.c.l.bf16 %v230
      %v263 = vunpack.c.l.bf16 %v231
      %v264 = vunpack.c.l.bf16 %v232
      %v265 = vunpack.c.l.bf16 %v233
      %v266 = vunpack.c.l.bf16 %v234
      %v267 = vunpack.c.l.bf16 %v235
      %v268 = vunpack.c.l.bf16 %v236
      %v269 = vunpack.c.l.bf16 %v237
      %v270 = vunpack.c.l.bf16 %v238
      %v271 = vunpack.c.l.bf16 %v239
      %v272 = vunpack.c.l.bf16 %v240
      %v273 = vunpack.c.l.bf16 %v241
      %v274 = vunpack.c.l.bf16 %v242
      %v275 = vunpack.c.l.bf16 %v243
      %v276 = vunpack.c.l.bf16 %v244
      %v277 = vunpack.c.l.bf16 %v245
      %v278 = vunpack.c.l.bf16 %v246
      %v279 = vunpack.c.l.bf16 %v247
      %v280 = vunpack.c.l.bf16 %v248
      %v281 = vunpack.c.l.bf16 %v249
      %v282 = vunpack.c.l.bf16 %v250
      %v283 = vunpack.c.l.bf16 %v251
      %v284 = vunpack.c.l.bf16 %v252
      %v285 = vunpack.c.l.bf16 %v253
      %v286 = vunpack.c.l.bf16 %v254
      %v287 = vunpack.c.l.bf16 %v255
      %v288 = vunpack.c.l.bf16 %v256
      %v289 = vunpack.c.l.bf16 %v257
      %v290 = vunpack.c.l.bf16 %v258
      %v291 = vunpack.c.l.bf16 %v259
      %v292 = vld [vmem:[%s1] sm:$0xff]
      %v293 = vld [vmem:[%s1 + $0x8] sm:$0xff]
      %v294 = vld [vmem:[%s1 + $0x10] sm:$0xff]
      %v295 = vld [vmem:[%s1 + $0x18] sm:$0xff]
      %v296 = vld [vmem:[%s2] sm:$0x1]
      %v298 = vperm.slane %v296, 0
      %vm300 = vcmask 261120
      %v302 = vsel %vm300, %v260, 0
      %v305 = vsel %vm300, %v261, 0
      %v308 = vsel %vm300, %v262, 0
      %v311 = vsel %vm300, %v263, 0
      %v314 = vsel %vm300, %v264, 0
      %v317 = vsel %vm300, %v265, 0
      %v320 = vsel %vm300, %v266, 0
      %v323 = vsel %vm300, %v267, 0
      %v326 = vsel %vm300, %v268, 0
      %v329 = vsel %vm300, %v269, 0
      %v332 = vsel %vm300, %v270, 0
      %v335 = vsel %vm300, %v271, 0
      %v338 = vsel %vm300, %v272, 0
      %v341 = vsel %vm300, %v273, 0
      %v344 = vsel %vm300, %v274, 0
      %v347 = vsel %vm300, %v275, 0
      %v350 = vsel %vm300, %v276, 0
      %v353 = vsel %vm300, %v277, 0
      %v356 = vsel %vm300, %v278, 0
      %v359 = vsel %vm300, %v279, 0
      %v362 = vsel %vm300, %v280, 0
      %v365 = vsel %vm300, %v281, 0
      %v368 = vsel %vm300, %v282, 0
      %v371 = vsel %vm300, %v283, 0
      %v374 = vsel %vm300, %v284, 0
      %v377 = vsel %vm300, %v285, 0
      %v380 = vsel %vm300, %v286, 0
      %v383 = vsel %vm300, %v287, 0
      %v386 = vsel %vm300, %v288, 0
      %v389 = vsel %vm300, %v289, 0
      %v392 = vsel %vm300, %v290, 0
      %v395 = vsel %vm300, %v291, 0
      %397 = vmatpush.msra.mxu0 0.0
      %398 = vmatpush.msra.mxu0 0.0
      %399 = vmatpush.msra.mxu0 0.0
      %400 = vmatpush.msra.mxu0 0.0
      %401 = vmatpush.msra.mxu0 0.0
      %402 = vmatpush.msra.mxu0 0.0
      %403 = vmatpush.msra.mxu0 0.0
      %404 = vmatpush.msra.mxu0 0.0
      %405 = vmatpush.msra.mxu0 0.0
      %406 = vmatpush.msra.mxu0 0.0
      %407 = vmatpush.msra.mxu0 0.0
      %408 = vmatpush.msra.mxu0 0.0
      %409 = vmatpush.msra.mxu0 %v295
      %410 = vmatpush.msra.mxu0 %v294
      %411 = vmatpush.msra.mxu0 %v293
      %412 = vmatpush.msra.mxu0 %v292
      %413 = vmatmul.f32.gmra.mxu0 %v302
      %v414 = vpop.f32.mrf.mxu0
      %v415 = vadd.f32 %v298, %v414
      %416 = vmatmul.f32.gmra.mxu0 %v305
      %v417 = vpop.f32.mrf.mxu0
      %v418 = vadd.f32 %v298, %v417
      %419 = vmatmul.f32.gmra.mxu0 %v308
      %v420 = vpop.f32.mrf.mxu0
      %v421 = vadd.f32 %v298, %v420
      %422 = vmatmul.f32.gmra.mxu0 %v311
      %v423 = vpop.f32.mrf.mxu0
      %v424 = vadd.f32 %v298, %v423
      %425 = vmatmul.f32.gmra.mxu0 %v314
      %v426 = vpop.f32.mrf.mxu0
      %v427 = vadd.f32 %v298, %v426
      %428 = vmatmul.f32.gmra.mxu0 %v317
      %v429 = vpop.f32.mrf.mxu0
      %v430 = vadd.f32 %v298, %v429
      %431 = vmatmul.f32.gmra.mxu0 %v320
      %v432 = vpop.f32.mrf.mxu0
      %v433 = vadd.f32 %v298, %v432
      %434 = vmatmul.f32.gmra.mxu0 %v323
      %v435 = vpop.f32.mrf.mxu0
      %v436 = vadd.f32 %v298, %v435
      %437 = vmatmul.f32.gmra.mxu0 %v326
      %v438 = vpop.f32.mrf.mxu0
      %v439 = vadd.f32 %v298, %v438
      %440 = vmatmul.f32.gmra.mxu0 %v329
      %v441 = vpop.f32.mrf.mxu0
      %v442 = vadd.f32 %v298, %v441
      %443 = vmatmul.f32.gmra.mxu0 %v332
      %v444 = vpop.f32.mrf.mxu0
      %v445 = vadd.f32 %v298, %v444
      %446 = vmatmul.f32.gmra.mxu0 %v335
      %v447 = vpop.f32.mrf.mxu0
      %v448 = vadd.f32 %v298, %v447
      %449 = vmatmul.f32.gmra.mxu0 %v338
      %v450 = vpop.f32.mrf.mxu0
      %v451 = vadd.f32 %v298, %v450
      %452 = vmatmul.f32.gmra.mxu0 %v341
      %v453 = vpop.f32.mrf.mxu0
      %v454 = vadd.f32 %v298, %v453
      %455 = vmatmul.f32.gmra.mxu0 %v344
      %v456 = vpop.f32.mrf.mxu0
      %v457 = vadd.f32 %v298, %v456
      %458 = vmatmul.f32.gmra.mxu0 %v347
      %v459 = vpop.f32.mrf.mxu0
      %v460 = vadd.f32 %v298, %v459
      %461 = vmatmul.f32.gmra.mxu0 %v350
      %v462 = vpop.f32.mrf.mxu0
      %v463 = vadd.f32 %v298, %v462
      %464 = vmatmul.f32.gmra.mxu0 %v353
      %v465 = vpop.f32.mrf.mxu0
      %v466 = vadd.f32 %v298, %v465
      %467 = vmatmul.f32.gmra.mxu0 %v356
      %v468 = vpop.f32.mrf.mxu0
      %v469 = vadd.f32 %v298, %v468
      %470 = vmatmul.f32.gmra.mxu0 %v359
      %v471 = vpop.f32.mrf.mxu0
      %v472 = vadd.f32 %v298, %v471
      %473 = vmatmul.f32.gmra.mxu0 %v362
      %v474 = vpop.f32.mrf.mxu0
      %v475 = vadd.f32 %v298, %v474
      %476 = vmatmul.f32.gmra.mxu0 %v365
      %v477 = vpop.f32.mrf.mxu0
      %v478 = vadd.f32 %v298, %v477
      %479 = vmatmul.f32.gmra.mxu0 %v368
      %v480 = vpop.f32.mrf.mxu0
      %v481 = vadd.f32 %v298, %v480
      %482 = vmatmul.f32.gmra.mxu0 %v371
      %v483 = vpop.f32.mrf.mxu0
      %v484 = vadd.f32 %v298, %v483
      %485 = vmatmul.f32.gmra.mxu0 %v374
      %v486 = vpop.f32.mrf.mxu0
      %v487 = vadd.f32 %v298, %v486
      %488 = vmatmul.f32.gmra.mxu0 %v377
      %v489 = vpop.f32.mrf.mxu0
      %v490 = vadd.f32 %v298, %v489
      %491 = vmatmul.f32.gmra.mxu0 %v380
      %v492 = vpop.f32.mrf.mxu0
      %v493 = vadd.f32 %v298, %v492
      %494 = vmatmul.f32.gmra.mxu0 %v383
      %v495 = vpop.f32.mrf.mxu0
      %v496 = vadd.f32 %v298, %v495
      %497 = vmatmul.f32.gmra.mxu0 %v386
      %v498 = vpop.f32.mrf.mxu0
      %v499 = vadd.f32 %v298, %v498
      %500 = vmatmul.f32.gmra.mxu0 %v389
      %v501 = vpop.f32.mrf.mxu0
      %v502 = vadd.f32 %v298, %v501
      %503 = vmatmul.f32.gmra.mxu0 %v392
      %v504 = vpop.f32.mrf.mxu0
      %v505 = vadd.f32 %v298, %v504
      %506 = vmatmul.f32.gmra.mxu0 %v395
      %v507 = vpop.f32.mrf.mxu0
      %v508 = vadd.f32 %v298, %v507
      %509 = vdwg.mxu0
      %v510 = vmax.f32 %v415, 0.0
      %v511 = vmax.f32 %v418, 0.0
      %v512 = vmax.f32 %v421, 0.0
      %v513 = vmax.f32 %v424, 0.0
      %v514 = vmax.f32 %v427, 0.0
      %v515 = vmax.f32 %v430, 0.0
      %v516 = vmax.f32 %v433, 0.0
      %v517 = vmax.f32 %v436, 0.0
      %v518 = vmax.f32 %v439, 0.0
      %v519 = vmax.f32 %v442, 0.0
      %v520 = vmax.f32 %v445, 0.0
      %v521 = vmax.f32 %v448, 0.0
      %v522 = vmax.f32 %v451, 0.0
      %v523 = vmax.f32 %v454, 0.0
      %v524 = vmax.f32 %v457, 0.0
      %v525 = vmax.f32 %v460, 0.0
      %v526 = vmax.f32 %v463, 0.0
      %v527 = vmax.f32 %v466, 0.0
      %v528 = vmax.f32 %v469, 0.0
      %v529 = vmax.f32 %v472, 0.0
      %v530 = vmax.f32 %v475, 0.0
      %v531 = vmax.f32 %v478, 0.0
      %v532 = vmax.f32 %v481, 0.0
      %v533 = vmax.f32 %v484, 0.0
      %v534 = vmax.f32 %v487, 0.0
      %v535 = vmax.f32 %v490, 0.0
      %v536 = vmax.f32 %v493, 0.0
      %v537 = vmax.f32 %v496, 0.0
      %v538 = vmax.f32 %v499, 0.0
      %v539 = vmax.f32 %v502, 0.0
      %v540 = vmax.f32 %v505, 0.0
      %v541 = vmax.f32 %v508, 0.0
      %v542 = vld [vmem:[%s3] sm:$0xff]
      %v543 = vld [vmem:[%s4] sm:$0x1]
      %v545 = vperm.slane %v543, 0
      %vm547 = vcmask 64512
      %v549 = vsel %vm547, %v510, 0
      %v552 = vsel %vm547, %v511, 0
      %v555 = vsel %vm547, %v512, 0
      %v558 = vsel %vm547, %v513, 0
      %v561 = vsel %vm547, %v514, 0
      %v564 = vsel %vm547, %v515, 0
      %v567 = vsel %vm547, %v516, 0
      %v570 = vsel %vm547, %v517, 0
      %v573 = vsel %vm547, %v518, 0
      %v576 = vsel %vm547, %v519, 0
      %v579 = vsel %vm547, %v520, 0
      %v582 = vsel %vm547, %v521, 0
      %v585 = vsel %vm547, %v522, 0
      %v588 = vsel %vm547, %v523, 0
      %v591 = vsel %vm547, %v524, 0
      %v594 = vsel %vm547, %v525, 0
      %v597 = vsel %vm547, %v526, 0
      %v600 = vsel %vm547, %v527, 0
      %v603 = vsel %vm547, %v528, 0
      %v606 = vsel %vm547, %v529, 0
      %v609 = vsel %vm547, %v530, 0
      %v612 = vsel %vm547, %v531, 0
      %v615 = vsel %vm547, %v532, 0
      %v618 = vsel %vm547, %v533, 0
      %v621 = vsel %vm547, %v534, 0
      %v624 = vsel %vm547, %v535, 0
      %v627 = vsel %vm547, %v536, 0
      %v630 = vsel %vm547, %v537, 0
      %v633 = vsel %vm547, %v538, 0
      %v636 = vsel %vm547, %v539, 0
      %v639 = vsel %vm547, %v540, 0
      %v642 = vsel %vm547, %v541, 0
      %644 = vmatpush.msra.mxu0 0.0
      %645 = vmatpush.msra.mxu0 0.0
      %646 = vmatpush.msra.mxu0 0.0
      %647 = vmatpush.msra.mxu0 0.0
      %648 = vmatpush.msra.mxu0 0.0
      %649 = vmatpush.msra.mxu0 0.0
      %650 = vmatpush.msra.mxu0 0.0
      %651 = vmatpush.msra.mxu0 0.0
      %652 = vmatpush.msra.mxu0 0.0
      %653 = vmatpush.msra.mxu0 0.0
      %654 = vmatpush.msra.mxu0 0.0
      %655 = vmatpush.msra.mxu0 0.0
      %656 = vmatpush.msra.mxu0 0.0
      %657 = vmatpush.msra.mxu0 0.0
      %658 = vmatpush.msra.mxu0 0.0
      %659 = vmatpush.msra.mxu0 %v542
      %660 = vmatmul.f32.gmra.mxu0 %v549
      %v661 = vpop.f32.mrf.mxu0
      %v662 = vadd.f32 %v545, %v661
      %663 = vmatmul.f32.gmra.mxu0 %v552
      %v664 = vpop.f32.mrf.mxu0
      %v665 = vadd.f32 %v545, %v664
      %666 = vmatmul.f32.gmra.mxu0 %v555
      %v667 = vpop.f32.mrf.mxu0
      %v668 = vadd.f32 %v545, %v667
      %669 = vmatmul.f32.gmra.mxu0 %v558
      %v670 = vpop.f32.mrf.mxu0
      %v671 = vadd.f32 %v545, %v670
      %672 = vmatmul.f32.gmra.mxu0 %v561
      %v673 = vpop.f32.mrf.mxu0
      %v674 = vadd.f32 %v545, %v673
      %675 = vmatmul.f32.gmra.mxu0 %v564
      %v676 = vpop.f32.mrf.mxu0
      %v677 = vadd.f32 %v545, %v676
      %678 = vmatmul.f32.gmra.mxu0 %v567
      %v679 = vpop.f32.mrf.mxu0
      %v680 = vadd.f32 %v545, %v679
      %681 = vmatmul.f32.gmra.mxu0 %v570
      %v682 = vpop.f32.mrf.mxu0
      %v683 = vadd.f32 %v545, %v682
      %684 = vmatmul.f32.gmra.mxu0 %v573
      %v685 = vpop.f32.mrf.mxu0
      %v686 = vadd.f32 %v545, %v685
      %687 = vmatmul.f32.gmra.mxu0 %v576
      %v688 = vpop.f32.mrf.mxu0
      %v689 = vadd.f32 %v545, %v688
      %690 = vmatmul.f32.gmra.mxu0 %v579
      %v691 = vpop.f32.mrf.mxu0
      %v692 = vadd.f32 %v545, %v691
      %693 = vmatmul.f32.gmra.mxu0 %v582
      %v694 = vpop.f32.mrf.mxu0
      %v695 = vadd.f32 %v545, %v694
      %696 = vmatmul.f32.gmra.mxu0 %v585
      %v697 = vpop.f32.mrf.mxu0
      %v698 = vadd.f32 %v545, %v697
      %699 = vmatmul.f32.gmra.mxu0 %v588
      %v700 = vpop.f32.mrf.mxu0
      %v701 = vadd.f32 %v545, %v700
      %702 = vmatmul.f32.gmra.mxu0 %v591
      %v703 = vpop.f32.mrf.mxu0
      %v704 = vadd.f32 %v545, %v703
      %705 = vmatmul.f32.gmra.mxu0 %v594
      %v706 = vpop.f32.mrf.mxu0
      %v707 = vadd.f32 %v545, %v706
      %708 = vmatmul.f32.gmra.mxu0 %v597
      %v709 = vpop.f32.mrf.mxu0
      %v710 = vadd.f32 %v545, %v709
      %711 = vmatmul.f32.gmra.mxu0 %v600
      %v712 = vpop.f32.mrf.mxu0
      %v713 = vadd.f32 %v545, %v712
      %714 = vmatmul.f32.gmra.mxu0 %v603
      %v715 = vpop.f32.mrf.mxu0
      %v716 = vadd.f32 %v545, %v715
      %717 = vmatmul.f32.gmra.mxu0 %v606
      %v718 = vpop.f32.mrf.mxu0
      %v719 = vadd.f32 %v545, %v718
      %720 = vmatmul.f32.gmra.mxu0 %v609
      %v721 = vpop.f32.mrf.mxu0
      %v722 = vadd.f32 %v545, %v721
      %723 = vmatmul.f32.gmra.mxu0 %v612
      %v724 = vpop.f32.mrf.mxu0
      %v725 = vadd.f32 %v545, %v724
      %726 = vmatmul.f32.gmra.mxu0 %v615
      %v727 = vpop.f32.mrf.mxu0
      %v728 = vadd.f32 %v545, %v727
      %729 = vmatmul.f32.gmra.mxu0 %v618
      %v730 = vpop.f32.mrf.mxu0
      %v731 = vadd.f32 %v545, %v730
      %732 = vmatmul.f32.gmra.mxu0 %v621
      %v733 = vpop.f32.mrf.mxu0
      %v734 = vadd.f32 %v545, %v733
      %735 = vmatmul.f32.gmra.mxu0 %v624
      %v736 = vpop.f32.mrf.mxu0
      %v737 = vadd.f32 %v545, %v736
      %738 = vmatmul.f32.gmra.mxu0 %v627
      %v739 = vpop.f32.mrf.mxu0
      %v740 = vadd.f32 %v545, %v739
      %741 = vmatmul.f32.gmra.mxu0 %v630
      %v742 = vpop.f32.mrf.mxu0
      %v743 = vadd.f32 %v545, %v742
      %744 = vmatmul.f32.gmra.mxu0 %v633
      %v745 = vpop.f32.mrf.mxu0
      %v746 = vadd.f32 %v545, %v745
      %747 = vmatmul.f32.gmra.mxu0 %v636
      %v748 = vpop.f32.mrf.mxu0
      %v749 = vadd.f32 %v545, %v748
      %750 = vmatmul.f32.gmra.mxu0 %v639
      %v751 = vpop.f32.mrf.mxu0
      %v752 = vadd.f32 %v545, %v751
      %753 = vmatmul.f32.gmra.mxu0 %v642
      %v754 = vpop.f32.mrf.mxu0
      %v755 = vadd.f32 %v545, %v754
      %756 = vdwg.mxu0
      %vm757 = vcmask 146432
      %758 = vst.msk [vmem:[%s226] sm:$0xff] %vm757, %v662
      %759 = vst.msk [vmem:[%s226 + $0x8] sm:$0xff] %vm757, %v665
      %760 = vst.msk [vmem:[%s226 + $0x10] sm:$0xff] %vm757, %v668
      %761 = vst.msk [vmem:[%s226 + $0x18] sm:$0xff] %vm757, %v671
      %762 = vst.msk [vmem:[%s226 + $0x20] sm:$0xff] %vm757, %v674
      %763 = vst.msk [vmem:[%s226 + $0x28] sm:$0xff] %vm757, %v677
      %764 = vst.msk [vmem:[%s226 + $0x30] sm:$0xff] %vm757, %v680
      %765 = vst.msk [vmem:[%s226 + $0x38] sm:$0xff] %vm757, %v683
      %766 = vst.msk [vmem:[%s226 + $0x40] sm:$0xff] %vm757, %v686
      %767 = vst.msk [vmem:[%s226 + $0x48] sm:$0xff] %vm757, %v689
      %768 = vst.msk [vmem:[%s226 + $0x50] sm:$0xff] %vm757, %v692
      %769 = vst.msk [vmem:[%s226 + $0x58] sm:$0xff] %vm757, %v695
      %770 = vst.msk [vmem:[%s226 + $0x60] sm:$0xff] %vm757, %v698
      %771 = vst.msk [vmem:[%s226 + $0x68] sm:$0xff] %vm757, %v701
      %772 = vst.msk [vmem:[%s226 + $0x70] sm:$0xff] %vm757, %v704
      %773 = vst.msk [vmem:[%s226 + $0x78] sm:$0xff] %vm757, %v707
      %774 = vst.msk [vmem:[%s226 + $0x80] sm:$0xff] %vm757, %v710
      %775 = vst.msk [vmem:[%s226 + $0x88] sm:$0xff] %vm757, %v713
      %776 = vst.msk [vmem:[%s226 + $0x90] sm:$0xff] %vm757, %v716
      %777 = vst.msk [vmem:[%s226 + $0x98] sm:$0xff] %vm757, %v719
      %778 = vst.msk [vmem:[%s226 + $0xa0] sm:$0xff] %vm757, %v722
      %779 = vst.msk [vmem:[%s226 + $0xa8] sm:$0xff] %vm757, %v725
      %780 = vst.msk [vmem:[%s226 + $0xb0] sm:$0xff] %vm757, %v728
      %781 = vst.msk [vmem:[%s226 + $0xb8] sm:$0xff] %vm757, %v731
      %782 = vst.msk [vmem:[%s226 + $0xc0] sm:$0xff] %vm757, %v734
      %783 = vst.msk [vmem:[%s226 + $0xc8] sm:$0xff] %vm757, %v737
      %784 = vst.msk [vmem:[%s226 + $0xd0] sm:$0xff] %vm757, %v740
      %785 = vst.msk [vmem:[%s226 + $0xd8] sm:$0xff] %vm757, %v743
      %786 = vst.msk [vmem:[%s226 + $0xe0] sm:$0xff] %vm757, %v746
      %787 = vst.msk [vmem:[%s226 + $0xe8] sm:$0xff] %vm757, %v749
      %788 = vst.msk [vmem:[%s226 + $0xf0] sm:$0xff] %vm757, %v752
      %789 = vst.msk [vmem:[%s226 + $0xf8] sm:$0xff] %vm757, %v755
      %s790 = smul.u32 32, %s16
      %p791 = scmp.lt.s32.totalorder %s790, 63
      %s792 = scalar_select %p791, %s790, 63
      %s793 = smul.addr %s792, 8
      %s794 = scalar_lea.vmem %s5, %s793
      // Predicated region
      $region41: #{tpu_custom_call.1} parent=39 // pred_check
        %p795 = pneg %p144
      $region42: #{tpu_custom_call.1} parent=39 // pred_check_branch
        %797 = sbr.rel (%p795) target = $region44
      $region43: #{tpu_custom_call.1} parent=39 // pred_region
        %s798 = smul.u32 32, %s16
      $region44: #{tpu_custom_call.1} parent=39 // pred_fallthru
        _
    $region40: #{tpu_custom_call.1} parent=5 // pred_fallthru
      _
    %p799 = scmp.le.s32.totalorder 2, %s11
    // Predicated region
    $region45: #{tpu_custom_call.1} parent=5 // pred_check
      %p800 = pneg %p799
    $region46: #{tpu_custom_call.1} parent=5 // pred_check_branch
      %802 = sbr.rel (%p800) target = $region48
    $region47: #{tpu_custom_call.1} parent=5 // pred_region
      %s803 = ssub.s32 %s11, 2
      // Predicated region
      $region49: #{tpu_custom_call.1} parent=47 // pred_check
        %p804 = pneg %p150
      $region50: #{tpu_custom_call.1} parent=47 // pred_check_branch
        %806 = sbr.rel (%p804) target = $region52
      $region51: #{tpu_custom_call.1} parent=47 // pred_region
        %s807 = smul.u32 32, %s17
        %p808 = scmp.lt.s32.totalorder %s807, 63
        %s809 = scalar_select %p808, %s807, 63
        %s810 = smul.addr %s809, 8
        %s811 = scalar_lea.vmem %s5, %s810
      $region52: #{tpu_custom_call.1} parent=47 // pred_fallthru
        _
    $region48: #{tpu_custom_call.1} parent=5 // pred_fallthru
      _
  $region6: #{tpu_custom_call.1} parent=0 // loop_footer
    %s15 = sadd.s32 1, %s11
  $region7: #{tpu_custom_call.1} parent=0 // loop_footer_branch
    %10 = sbr.rel target = $region3
  $region8: #{tpu_custom_call.1} parent=0 // loop_exit
    _

</llo_original>
